<compile_context>
chip_gen: v6e
topology: v6e:2x2x1
jax: 0.10.0
libtpu: 0.0.40
codegen_flags: <defaults>
</compile_context>

<pallas_src>
import functools

import jax
import jax.numpy as jnp
from jax import lax
from jax.experimental import pallas as pl
from jax.experimental.pallas import tpu as pltpu


def _round_up(x, m):
    return ((x + m - 1) // m) * m


def _accumulate_pair_loss(acc_ref, ea, en, w, blk, tp, n_pairs, m_pos, m_neg):
    """Per-block soft-margin loss + masked accumulate into acc_ref.

    ea / en : (TP, D) float32 anchor / negative embeddings.
    w       : (TP, 1) float32 Jaccard weights.
    blk     : global block index (traced int32), n_pairs: valid pair count.
    """
    sim = jnp.sum(ea * en, axis=-1, keepdims=True)          # (TP,1) XLU lane reduce
    d = 1.0 - sim
    loss = (w * jnp.maximum(d - m_pos, 0.0)
            + (1.0 - w) * jnp.maximum(m_neg - d, 0.0))       # (TP,1) VPU

    full = (blk + 1) * tp <= n_pairs                          # block entirely valid?

    @pl.when(full)
    def _():
        acc_ref[...] += loss

    @pl.when(jnp.logical_not(full))
    def _():
        # Masked AFTER computing the loss so garbage (NaN/Inf) tail rows still
        # contribute exactly 0.
        row = lax.broadcasted_iota(jnp.int32, (tp, 1), 0) + blk * tp
        acc_ref[...] += jnp.where(row < n_pairs, loss, 0.0)


# ---------------------------------------------------------------------------
# Path B: embeddings pre-gathered in XLA (small rows, < ~1 KiB each).
# ---------------------------------------------------------------------------
def _pregather_kernel(n_pairs_ref, a_ref, g_ref, w_ref, out_ref, acc_ref,
                      *, m_pos, m_neg, tp, bpc):
    c = pl.program_id(0)
    i = pl.program_id(1)
    nb = pl.num_programs(1)
    n_pairs = n_pairs_ref[0]
    blk = c * bpc + i

    @pl.when(i == 0)
    def _():
        acc_ref[...] = jnp.zeros_like(acc_ref)

    ea = a_ref[...].astype(jnp.float32)
    en = g_ref[...].astype(jnp.float32)
    _accumulate_pair_loss(acc_ref, ea, en, w_ref[...], blk, tp, n_pairs,
                          m_pos, m_neg)

    @pl.when(i == nb - 1)
    def _():
        out_ref[...] = jnp.full(out_ref.shape, jnp.sum(acc_ref[...]),
                                dtype=out_ref.dtype)


# ---------------------------------------------------------------------------
# Path A: fused in-kernel gather (rows >= ~1 KiB), double-buffered per-row DMA.
# ---------------------------------------------------------------------------
def _fused_gather_kernel(n_pairs_ref, anchors_ref, negatives_ref,
                         emb_ref, w_ref, out_ref,
                         anc_buf, neg_buf, sem, acc_ref,
                         *, m_pos, m_neg, tp, bpc):
    c = pl.program_id(0)
    i = pl.program_id(1)
    nb = pl.num_programs(1)
    n_pairs = n_pairs_ref[0]
    blk = c * bpc + i
    slot = i % 2

    def start_gather(block_idx, s):
        base = block_idx * tp

        @pl.loop(0, tp)
        def _(r):
            # Clamp so the SMEM index read and the HBM row DMA stay in bounds;
            # out-of-range rows are masked to zero in the accumulate.
            pair = jnp.minimum(base + r, n_pairs - 1)
            a_row = anchors_ref[pair]
            g_row = negatives_ref[pair]
            pltpu.make_async_copy(emb_ref.at[pl.ds(a_row, 1), :],
                                  anc_buf.at[s, pl.ds(r, 1), :],
                                  sem.at[s, 0]).start()
            pltpu.make_async_copy(emb_ref.at[pl.ds(g_row, 1), :],
                                  neg_buf.at[s, pl.ds(r, 1), :],
                                  sem.at[s, 1]).start()

    def wait_gather(s):
        @pl.loop(0, tp)
        def _(r):
            pltpu.make_async_copy(emb_ref.at[pl.ds(0, 1), :],
                                  anc_buf.at[s, pl.ds(r, 1), :],
                                  sem.at[s, 0]).wait()
            pltpu.make_async_copy(emb_ref.at[pl.ds(0, 1), :],
                                  neg_buf.at[s, pl.ds(r, 1), :],
                                  sem.at[s, 1]).wait()

    @pl.when(i == 0)
    def _():
        acc_ref[...] = jnp.zeros_like(acc_ref)
        start_gather(blk, slot)            # prime buffer slot 0

    wait_gather(slot)

    @pl.when(i + 1 < nb)
    def _():
        start_gather(blk + 1, 1 - slot)    # prefetch next block during compute

    ea = anc_buf[slot].astype(jnp.float32)
    en = neg_buf[slot].astype(jnp.float32)
    _accumulate_pair_loss(acc_ref, ea, en, w_ref[...], blk, tp, n_pairs,
                          m_pos, m_neg)

    @pl.when(i == nb - 1)
    def _():
        out_ref[...] = jnp.full(out_ref.shape, jnp.sum(acc_ref[...]),
                                dtype=out_ref.dtype)


# ---------------------------------------------------------------------------
# Wrapper
# ---------------------------------------------------------------------------
def dynamically_neutral_miner_loss(embeddings, jaccard, miner_outputs,
                                   margin_pos: float = 0.2,
                                   margin_neg: float = 0.8,
                                   block_pairs=None,
                                   num_cores: int = 2,
                                   stream_dtype=None,
                                   fused_gather_min_row_bytes: int = 1024):
    anchors, negatives = miner_outputs
    anchors = anchors.astype(jnp.int32)
    negatives = negatives.astype(jnp.int32)

    n, d = embeddings.shape
    p = int(anchors.shape[0])
    if p == 0:
        # torch .mean() over an empty tensor is NaN.
        return jnp.float32(float("nan"))

    # Optional: stream embeddings in a narrower dtype (e.g. bf16) to halve the
    # dominant HBM read; the kernel always upcasts to f32 and accumulates f32.
    if stream_dtype is not None:
        embeddings = embeddings.astype(stream_dtype)
    itemsize = jnp.dtype(embeddings.dtype).itemsize
    d_pad = _round_up(d, 128)

    # Tiny [P] stream; the 2-D advanced-index gather stays in XLA glue.
    w = jaccard[anchors, negatives].astype(jnp.float32)[:, None]

    # ---- tile size: amortize the ~0.35us/grid-step overhead -----------------
    bytes_per_pair = 2 * d_pad * itemsize                     # combined a+n bytes
    tp_target = _round_up(pl.cdiv(2 * 1024 * 1024, bytes_per_pair), 8)
    tp_vmem = max(8, ((24 * 1024 * 1024) // (2 * bytes_per_pair)) // 8 * 8)
    tp = min(tp_target, tp_vmem)
    if block_pairs is not None:
        tp = min(tp, _round_up(int(block_pairs), 8))
    tp = max(8, min(tp, _round_up(p, 8)))

    use_fused = d * itemsize >= fused_gather_min_row_bytes
    if use_fused:
        tp = min(tp, 1024)     # bound outstanding per-row DMAs per block

    nblocks = pl.cdiv(p, tp)              # NOT padded; in-kernel mask handles tail
    nc = max(1, int(num_cores)) if nblocks >= 2 else 1
    bpc = pl.cdiv(nblocks, nc)

    n_pairs_arr = jnp.array([p], dtype=jnp.int32)

    def blk_map(c, i, *_):
        # Clamp so a core's trailing (all-masked) blocks never index OOB.
        return (jnp.minimum(c * bpc + i, nblocks - 1), 0)

    out_shape = jax.ShapeDtypeStruct((nc, 1, 128), jnp.float32)
    out_spec = pl.BlockSpec((1, 1, 128), lambda c, i, *_: (c, 0, 0))

    # VMEM footprint (lane-padded) + headroom; never ask for v7x's full 64 MiB.
    stream_bytes = tp * d_pad * itemsize
    w_bytes = tp * 128 * 4
    footprint = 2 * 2 * stream_bytes + 2 * w_bytes + w_bytes
    vmem_limit = int(min(max(int(footprint * 1.5) + (4 << 20), 16 << 20),
                         48 << 20))

    if use_fused:
        # NOTE: anchors/negatives live in SMEM (scalar prefetch); fine for
        # typical pair counts, avoid for multi-100K-pair batches.
        kernel = functools.partial(_fused_gather_kernel,
                                   m_pos=float(margin_pos),
                                   m_neg=float(margin_neg),
                                   tp=tp, bpc=bpc)
        grid_spec = pltpu.PrefetchScalarGridSpec(
            num_scalar_prefetch=3,
            grid=(nc, bpc),
            in_specs=[
                pl.BlockSpec(memory_space=pl.ANY),   # embeddings stay in HBM
                pl.BlockSpec((tp, 1), blk_map),      # w
            ],
            out_specs=out_spec,
            scratch_shapes=[
                pltpu.VMEM((2, tp, d), embeddings.dtype),   # anchor rows, dbl-buf
                pltpu.VMEM((2, tp, d), embeddings.dtype),   # negative rows
                pltpu.SemaphoreType.DMA((2, 2)),            # [slot, stream]
                pltpu.VMEM((tp, 1), jnp.float32),           # accumulator
            ],
        )
        args = (n_pairs_arr, anchors, negatives, embeddings, w)
    else:
        # Small rows: per-row DMA overhead would dominate; pre-gather dense
        # contiguous [P, D] streams in XLA instead.
        emb_a = jnp.take(embeddings, anchors, axis=0)
        emb_n = jnp.take(embeddings, negatives, axis=0)
        kernel = functools.partial(_pregather_kernel,
                                   m_pos=float(margin_pos),
                                   m_neg=float(margin_neg),
                                   tp=tp, bpc=bpc)
        grid_spec = pltpu.PrefetchScalarGridSpec(
            num_scalar_prefetch=1,
            grid=(nc, bpc),
            in_specs=[
                pl.BlockSpec((tp, d), blk_map),      # anchor rows
                pl.BlockSpec((tp, d), blk_map),      # negative rows
                pl.BlockSpec((tp, 1), blk_map),      # w
            ],
            out_specs=out_spec,
            scratch_shapes=[pltpu.VMEM((tp, 1), jnp.float32)],
        )
        args = (n_pairs_arr, emb_a, emb_n, w)

    partials = pl.pallas_call(
        kernel,
        out_shape=out_shape,
        grid_spec=grid_spec,
        compiler_params=pltpu.CompilerParams(
            dimension_semantics=("parallel", "arbitrary"),
            vmem_limit_bytes=vmem_limit),
    )(*args)

    return jnp.sum(partials[:, 0, 0]) / jnp.float32(p)


# ---------------------------------------------------------------------------
# Self-test
# ---------------------------------------------------------------------------
if __name__ == "__main__":
    def reference(emb, jac, a, g, m_pos=0.2, m_neg=0.8):
        sim = jnp.sum(emb[a] * emb[g], axis=1)
        d = 1.0 - sim
        w = jac[a, g]
        return jnp.mean(w * jnp.maximum(d - m_pos, 0.0)
                        + (1.0 - w) * jnp.maximum(m_neg - d, 0.0))

    key = jax.random.PRNGKey(0)

    cases = [
        # (name, N, D, P, block_pairs)
        ("small-pregather",        16, 128,  24, None),
        ("fused-gather",           32, 256,  40, None),
        ("multiblock-2core-mask",  16, 128, 100, 32),
        ("fused-multiblock-mask",  32, 256, 100, 32),
        ("odd-blocks-clamped",     16, 128,  72, 24),
    ]
    for name, N, D, P, bp in cases:
        key, k1, k2, k3, k4 = jax.random.split(key, 5)
        emb = jax.random.normal(k1, (N, D), dtype=jnp.float32)
        emb = emb / jnp.linalg.norm(emb, axis=1, keepdims=True)
        jac = jax.random.uniform(k2, (N, N), dtype=jnp.float32)
        anchors = jax.random.randint(k3, (P,), 0, N, dtype=jnp.int32)
        negatives = jax.random.randint(k4, (P,), 0, N, dtype=jnp.int32)

        loss = dynamically_neutral_miner_loss(emb, jac, (anchors, negatives),
                                              block_pairs=bp)
        loss = jax.block_until_ready(loss)
        ref = reference(emb, jac, anchors, negatives)
        assert jnp.allclose(loss, ref, atol=1e-5, rtol=1e-5), (
            name, float(loss), float(ref))

    print("KERNEL_OK")
</pallas_src>

<mosaic_0001>
module attributes {stable_mosaic.version = 11 : i64} {
  func.func @_pregather_kernel(%arg0: i32, %arg1: i32, %arg2: memref<1xi32, #tpu.memory_space<smem>>, %arg3: memref<24x128xf32, #tpu.memory_space<vmem>>, %arg4: memref<24x128xf32, #tpu.memory_space<vmem>>, %arg5: memref<24x1xf32, #tpu.memory_space<vmem>>, %arg6: memref<1x1x128xf32, #tpu.memory_space<vmem>>, %arg7: memref<24x1xf32, #tpu.memory_space<vmem>>) attributes {dimension_semantics = [#tpu.dimension_semantics<parallel>, #tpu.dimension_semantics<arbitrary>], iteration_bounds = array<i64: 1, 1>, scalar_prefetch = 1 : i64, scratch_operands = 1 : i64, tpu.core_type = #tpu.core_type<tc>, window_params = [{transform_indices = @transform_0, window_bounds = array<i64: 24, 128>}, {transform_indices = @transform_1, window_bounds = array<i64: 24, 128>}, {transform_indices = @transform_2, window_bounds = array<i64: 24, 1>}, {transform_indices = @transform_3, window_bounds = array<i64: 1, 1, 128>}]} {
    %c0 = arith.constant 0 : index
    %0 = memref.load %arg2[%c0] : memref<1xi32, #tpu.memory_space<smem>>
    %c1_i32 = arith.constant 1 : i32
    %1 = arith.muli %arg0, %c1_i32 : i32
    %2 = arith.addi %1, %arg1 : i32
    %c0_i32 = arith.constant 0 : i32
    %3 = arith.cmpi eq, %arg1, %c0_i32 : i32
    %4 = arith.extui %3 : i1 to i32
    %c0_i32_0 = arith.constant 0 : i32
    %5 = arith.cmpi ne, %4, %c0_i32_0 : i32
    scf.if %5 {
      %cst_18 = arith.constant 0.000000e+00 : f32
      %38 = vector.broadcast %cst_18 : f32 to vector<24x1xf32>
      %c0_19 = arith.constant 0 : index
      %c0_20 = arith.constant 0 : index
      %39 = vector.load %arg7[%c0_19, %c0_20] : memref<24x1xf32, #tpu.memory_space<vmem>>, vector<24x1xf32>
      tpu.vector_store %arg7[%c0_19, %c0_20], %38 {strides = array<i32>} : memref<24x1xf32, #tpu.memory_space<vmem>>, vector<24x1xf32>,
    } else {
    }
    %c0_1 = arith.constant 0 : index
    %c0_2 = arith.constant 0 : index
    %6 = vector.load %arg3[%c0_1, %c0_2] : memref<24x128xf32, #tpu.memory_space<vmem>>, vector<24x128xf32>
    %c0_3 = arith.constant 0 : index
    %c0_4 = arith.constant 0 : index
    %7 = vector.load %arg4[%c0_3, %c0_4] : memref<24x128xf32, #tpu.memory_space<vmem>>, vector<24x128xf32>
    %c0_5 = arith.constant 0 : index
    %c0_6 = arith.constant 0 : index
    %8 = vector.load %arg5[%c0_5, %c0_6] : memref<24x1xf32, #tpu.memory_space<vmem>>, vector<24x1xf32>
    %9 = arith.mulf %6, %7 : vector<24x128xf32>
    %cst = arith.constant dense<0.000000e+00> : vector<24xf32>
    %10 = vector.multi_reduction <add>, %9, %cst [1] : vector<24x128xf32> to vector<24xf32>
    %11 = vector.shape_cast %10 : vector<24xf32> to vector<24x1xf32>
    %cst_7 = arith.constant 1.000000e+00 : f32
    %12 = vector.broadcast %cst_7 : f32 to vector<24x1xf32>
    %13 = arith.subf %12, %11 : vector<24x1xf32>
    %cst_8 = arith.constant 2.000000e-01 : f32
    %14 = vector.broadcast %cst_8 : f32 to vector<24x1xf32>
    %15 = arith.subf %13, %14 : vector<24x1xf32>
    %cst_9 = arith.constant 0.000000e+00 : f32
    %16 = vector.broadcast %cst_9 : f32 to vector<24x1xf32>
    %17 = arith.maximumf %15, %16 : vector<24x1xf32>
    %18 = arith.mulf %8, %17 : vector<24x1xf32>
    %cst_10 = arith.constant 1.000000e+00 : f32
    %19 = vector.broadcast %cst_10 : f32 to vector<24x1xf32>
    %20 = arith.subf %19, %8 : vector<24x1xf32>
    %cst_11 = arith.constant 8.000000e-01 : f32
    %21 = vector.broadcast %cst_11 : f32 to vector<24x1xf32>
    %22 = arith.subf %21, %13 : vector<24x1xf32>
    %cst_12 = arith.constant 0.000000e+00 : f32
    %23 = vector.broadcast %cst_12 : f32 to vector<24x1xf32>
    %24 = arith.maximumf %22, %23 : vector<24x1xf32>
    %25 = arith.mulf %20, %24 : vector<24x1xf32>
    %26 = arith.addf %18, %25 : vector<24x1xf32>
    %c1_i32_13 = arith.constant 1 : i32
    %27 = arith.addi %2, %c1_i32_13 : i32
    %c24_i32 = arith.constant 24 : i32
    %28 = arith.muli %27, %c24_i32 : i32
    %29 = arith.cmpi sle, %28, %0 : i32
    %30 = arith.extui %29 : i1 to i32
    %c0_i32_14 = arith.constant 0 : i32
    %31 = arith.cmpi ne, %30, %c0_i32_14 : i32
    scf.if %31 {
      %c0_18 = arith.constant 0 : index
      %c0_19 = arith.constant 0 : index
      %38 = vector.load %arg7[%c0_18, %c0_19] : memref<24x1xf32, #tpu.memory_space<vmem>>, vector<24x1xf32>
      %39 = arith.addf %38, %26 : vector<24x1xf32>
      %c0_20 = arith.constant 0 : index
      %c0_21 = arith.constant 0 : index
      %40 = vector.load %arg7[%c0_20, %c0_21] : memref<24x1xf32, #tpu.memory_space<vmem>>, vector<24x1xf32>
      tpu.vector_store %arg7[%c0_20, %c0_21], %39 {strides = array<i32>} : memref<24x1xf32, #tpu.memory_space<vmem>>, vector<24x1xf32>,
    } else {
    }
    %true = arith.constant true
    %32 = arith.xori %29, %true : i1
    %33 = arith.extui %32 : i1 to i32
    %c0_i32_15 = arith.constant 0 : i32
    %34 = arith.cmpi ne, %33, %c0_i32_15 : i32
    scf.if %34 {
      %38 = tpu.iota {dimensions = array<i32: 0>} : vector<24x1xi32>
      %c24_i32_18 = arith.constant 24 : i32
      %39 = arith.muli %2, %c24_i32_18 : i32
      %40 = vector.broadcast %39 : i32 to vector<24x1xi32>
      %41 = arith.addi %38, %40 : vector<24x1xi32>
      %c0_19 = arith.constant 0 : index
      %c0_20 = arith.constant 0 : index
      %42 = vector.load %arg7[%c0_19, %c0_20] : memref<24x1xf32, #tpu.memory_space<vmem>>, vector<24x1xf32>
      %43 = vector.broadcast %0 : i32 to vector<24x1xi32>
      %44 = arith.cmpi slt, %41, %43 : vector<24x1xi32>
      %cst_21 = arith.constant 0.000000e+00 : f32
      %45 = vector.broadcast %cst_21 : f32 to vector<24x1xf32>
      %46 = arith.select %44, %26, %45 : vector<24x1xi1>, vector<24x1xf32>
      %47 = arith.addf %42, %46 : vector<24x1xf32>
      %c0_22 = arith.constant 0 : index
      %c0_23 = arith.constant 0 : index
      %48 = vector.load %arg7[%c0_22, %c0_23] : memref<24x1xf32, #tpu.memory_space<vmem>>, vector<24x1xf32>
      tpu.vector_store %arg7[%c0_22, %c0_23], %47 {strides = array<i32>} : memref<24x1xf32, #tpu.memory_space<vmem>>, vector<24x1xf32>,
    } else {
    }
    %c0_i32_16 = arith.constant 0 : i32
    %35 = arith.cmpi eq, %arg1, %c0_i32_16 : i32
    %36 = arith.extui %35 : i1 to i32
    %c0_i32_17 = arith.constant 0 : i32
    %37 = arith.cmpi ne, %36, %c0_i32_17 : i32
    scf.if %37 {
      %c0_18 = arith.constant 0 : index
      %c0_19 = arith.constant 0 : index
      %38 = vector.load %arg7[%c0_18, %c0_19] : memref<24x1xf32, #tpu.memory_space<vmem>>, vector<24x1xf32>
      %39 = vector.shape_cast %38 : vector<24x1xf32> to vector<1x24x1xf32>
      %cst_20 = arith.constant dense<0.000000e+00> : vector<1xf32>
      %40 = vector.multi_reduction <add>, %39, %cst_20 [1, 2] : vector<1x24x1xf32> to vector<1xf32>
      %41 = vector.shape_cast %40 : vector<1xf32> to vector<1x1x1xf32>
      %42 = vector.extract %41[0, 0, 0] : f32 from vector<1x1x1xf32>
      %43 = vector.broadcast %42 : f32 to vector<1x1x128xf32>
      %c0_21 = arith.constant 0 : index
      %c0_22 = arith.constant 0 : index
      %c0_23 = arith.constant 0 : index
      %44 = vector.load %arg6[%c0_21, %c0_22, %c0_23] : memref<1x1x128xf32, #tpu.memory_space<vmem>>, vector<1x1x128xf32>
      tpu.vector_store %arg6[%c0_21, %c0_22, %c0_23], %43 {strides = array<i32>} : memref<1x1x128xf32, #tpu.memory_space<vmem>>, vector<1x1x128xf32>,
    } else {
    }
    return
  }
  func.func @transform_0(%arg0: i32, %arg1: i32, %arg2: memref<1xi32, #tpu.memory_space<smem>>) -> (i32, i32) {
    %c1_i32 = arith.constant 1 : i32
    %0 = arith.muli %arg0, %c1_i32 : i32
    %1 = arith.addi %0, %arg1 : i32
    %c0_i32 = arith.constant 0 : i32
    %2 = arith.minsi %1, %c0_i32 : i32
    %c0_i32_0 = arith.constant 0 : i32
    %c0_i32_1 = arith.constant 0 : i32
    return %2, %c0_i32_0 : i32, i32
  }
  func.func @transform_1(%arg0: i32, %arg1: i32, %arg2: memref<1xi32, #tpu.memory_space<smem>>) -> (i32, i32) {
    %c1_i32 = arith.constant 1 : i32
    %0 = arith.muli %arg0, %c1_i32 : i32
    %1 = arith.addi %0, %arg1 : i32
    %c0_i32 = arith.constant 0 : i32
    %2 = arith.minsi %1, %c0_i32 : i32
    %c0_i32_0 = arith.constant 0 : i32
    %c0_i32_1 = arith.constant 0 : i32
    return %2, %c0_i32_0 : i32, i32
  }
  func.func @transform_2(%arg0: i32, %arg1: i32, %arg2: memref<1xi32, #tpu.memory_space<smem>>) -> (i32, i32) {
    %c1_i32 = arith.constant 1 : i32
    %0 = arith.muli %arg0, %c1_i32 : i32
    %1 = arith.addi %0, %arg1 : i32
    %c0_i32 = arith.constant 0 : i32
    %2 = arith.minsi %1, %c0_i32 : i32
    %c0_i32_0 = arith.constant 0 : i32
    %c0_i32_1 = arith.constant 0 : i32
    return %2, %c0_i32_0 : i32, i32
  }
  func.func @transform_3(%arg0: i32, %arg1: i32, %arg2: memref<1xi32, #tpu.memory_space<smem>>) -> (i32, i32, i32) {
    %c0_i32 = arith.constant 0 : i32
    %c0_i32_0 = arith.constant 0 : i32
    %c0_i32_1 = arith.constant 0 : i32
    return %arg0, %c0_i32, %c0_i32_0 : i32, i32, i32
  }
}

</mosaic_0001>

<llo_original>
// kernel: tpu_custom_call.1
$region0: #{tpu_custom_call.1}
  #allocation0 [shape = 'u32[]', space=smem, size = 0x4, offset = 0x4, fixed_abs, tag = 'smem constant byte address 0x4 - core index']
  #allocation1 [shape = 'u32[144,128]{1,0:T(1,128)}', space=vmem, size = 0x12000, scoped, tag = 'internal scratch']
  #allocation2 [shape = 'f32[24,1]{1,0:T(8,128)}', space=vmem, size = 0x3000, scoped, tag = 'scratch operand']
  #allocation3 [shape = 's32[1]{0}', space=sflag, size = 0x4, scoped, tag = 'scoped memory for tpu_custom_call.1']
  #allocation4 [shape = 's32[1]{0:T(128)S(6)}', space=smem, size = 0x200, scoped, tag = 'prefetched SMEM operand 0']
  %s0 = inlined_call_operand.<no memory space> [shape: s32[1], index: 0, kind: input, shape index: {}]
  %s1 = inlined_call_operand.vmem [shape: f32[24,128], index: 1, kind: input, shape index: {}]
  %s2 = inlined_call_operand.hbm [shape: f32[24,128], index: 2, kind: input, shape index: {}]
  %s3 = inlined_call_operand.vmem [shape: f32[24,1], index: 3, kind: input, shape index: {}]
  %s4 = inlined_call_operand.hbm [shape: f32[1,1,128], index: 4, kind: output, shape index: {}]
  %s5 = sld [smem:[#allocation0]]
  $region42: #{tpu_custom_call.1} parent=0
    _
  %s7 = ssub.s32 1, %s5
  %s8 = scalar_select 0, %s7, %s5
  %9 = sst [smem:[#allocation4]] %s0
  $region1: #{tpu_custom_call.1} parent=0
    #allocation5 [shape = 'u8[12288]{0}', space=vmem, size = 0x3000, scoped, tag = 'input window, operand 2, single buffered']
    #allocation6 [shape = 's32[1]{0}', space=sflag, size = 0x4, scoped, tag = 'scoped memory for tpu_custom_call.1']
    #allocation7 [shape = 's32[1]{0}', space=sflag, size = 0x4, scoped, tag = 'scoped memory for tpu_custom_call.1']
    #allocation8 [shape = 'u8[512]{0}', space=vmem, size = 0x400, scoped, tag = 'output window, operand 0, single buffered']
    %10 = vsyncpa [#allocation6], 0
    %11 = vsyncpa [#allocation7], 0
    // Predicated region
    $region2: #{tpu_custom_call.1} parent=1 // pred_check
      _
    $region3: #{tpu_custom_call.1} parent=1 // pred_check_branch
      %13 = sbr.rel (0) target = $region5
    $region4: #{tpu_custom_call.1} parent=1 // pred_region
      %s14 = sadd.s32 0, 0
      %p15 = scmp.lt.s32.totalorder %s14, 0
      %s16 = scalar_select %p15, %s14, 0
      %s17 = smul.u32 3, %s16
      %p18 = scmp.lt.s32.totalorder %s17, 2
      %s19 = scalar_select %p18, %s17, 2
      %s20 = smul.addr %s19, 8
      %s21 = scalar_lea.vmem %s1, %s20
      %s22 = sadd.s32 0, 0
      %p23 = scmp.lt.s32.totalorder %s22, 0
      %s24 = scalar_select %p23, %s22, 0
      %s25 = smul.u32 3, %s24
    $region5: #{tpu_custom_call.1} parent=1 // pred_fallthru
      _
    // Predicated region
    $region6: #{tpu_custom_call.1} parent=1 // pred_check
      _
    $region7: #{tpu_custom_call.1} parent=1 // pred_check_branch
      %27 = sbr.rel (0) target = $region9
    $region8: #{tpu_custom_call.1} parent=1 // pred_region
      %s28 = sadd.s32 0, 0
      %p29 = scmp.lt.s32.totalorder %s28, 0
      %s30 = scalar_select %p29, %s28, 0
      %s31 = smul.u32 3, %s30
      %s33 = ssub.s32 384, 384
      %34 = vsyncadd [#allocation6], %s33
      %s35 = smul.addr %s31, 128
      %s36 = scalar_lea.hbm %s2, %s35
      %s37 = sshll.u32 [#allocation5], 4
      %s38 = int_to_ptr.vmem [resolvable:$true] %s37
      %43 = dma.hbm_to_vmem [thread:$0]  %s36, 384, %s38, [#allocation6], 128, 128, 8
    $region9: #{tpu_custom_call.1} parent=1 // pred_fallthru
      _
    // Predicated region
    $region10: #{tpu_custom_call.1} parent=1 // pred_check
      _
    $region11: #{tpu_custom_call.1} parent=1 // pred_check_branch
      %45 = sbr.rel (0) target = $region13
    $region12: #{tpu_custom_call.1} parent=1 // pred_region
      %s46 = sadd.s32 0, 0
      %p47 = scmp.lt.s32.totalorder %s46, 0
      %s48 = scalar_select %p47, %s46, 0
      %s49 = smul.u32 3, %s48
      %p50 = scmp.lt.s32.totalorder %s49, 2
      %s51 = scalar_select %p50, %s49, 2
      %s52 = smul.addr %s51, 8
      %s53 = scalar_lea.vmem %s3, %s52
      %s54 = sadd.s32 0, 0
      %p55 = scmp.lt.s32.totalorder %s54, 0
      %s56 = scalar_select %p55, %s54, 0
      %s57 = smul.u32 3, %s56
    $region13: #{tpu_custom_call.1} parent=1 // pred_fallthru
      _
    // Predicated region
    $region14: #{tpu_custom_call.1} parent=1 // pred_check
      _
    $region15: #{tpu_custom_call.1} parent=1 // pred_check_branch
      %59 = sbr.rel (0) target = $region17
    $region16: #{tpu_custom_call.1} parent=1 // pred_region
      %60 = dma.done [#allocation6], 384
    $region17: #{tpu_custom_call.1} parent=1 // pred_fallthru
      _
    %s61 = sadd.s32 0, 0
    %p62 = scmp.lt.s32.totalorder %s61, 0
    %s63 = scalar_select %p62, %s61, 0
    %s64 = smul.u32 3, %s63
    %p65 = scmp.lt.s32.totalorder %s64, 2
    %s66 = scalar_select %p65, %s64, 2
    %s67 = smul.addr %s66, 8
    %s68 = scalar_lea.vmem %s1, %s67
    %s69 = sadd.s32 0, 0
    %p70 = scmp.lt.s32.totalorder %s69, 0
    %s71 = scalar_select %p70, %s69, 0
    %s72 = smul.u32 3, %s71
    %p73 = scmp.lt.s32.totalorder %s72, 2
    %s74 = scalar_select %p73, %s72, 2
    %s75 = smul.addr %s74, 8
    %s76 = scalar_lea.vmem %s3, %s75
    %s77 = sadd.s32 0, 0
    %p78 = scmp.lt.s32.totalorder %s77, 0
    %s79 = scalar_select %p78, %s77, 0
    %s80 = smul.u32 3, %s79
    %p81 = scmp.lt.s32.totalorder %s80, 2
    %s82 = scalar_select %p81, %s80, 2
    %s83 = smul.addr %s82, 8
    %s84 = scalar_lea.vmem %s1, %s83
    %s85 = sadd.s32 0, 0
    %p86 = scmp.lt.s32.totalorder %s85, 0
    %s87 = scalar_select %p86, %s85, 0
    %s88 = smul.u32 3, %s87
    %s89 = sadd.s32 0, 0
    %p90 = scmp.lt.s32.totalorder %s89, 0
    %s91 = scalar_select %p90, %s89, 0
    %s92 = smul.u32 3, %s91
    %s93 = sadd.s32 0, 0
    %p94 = scmp.lt.s32.totalorder %s93, 0
    %s95 = scalar_select %p94, %s93, 0
    %s96 = smul.u32 3, %s95
    %p97 = scmp.lt.s32.totalorder %s96, 2
    %s98 = scalar_select %p97, %s96, 2
    %s99 = smul.addr %s98, 8
    %s100 = scalar_lea.vmem %s3, %s99
    %s101 = sadd.s32 0, 0
    %p102 = scmp.lt.s32.totalorder %s101, 0
    %s103 = scalar_select %p102, %s101, 0
    %s104 = smul.u32 3, %s103
    %s105 = sld [smem:[#allocation4]]
    %s106 = sadd.s32 0, 0
    %p107 = scmp.eq.s32.totalorder 0, 0
    // Predicated region
    $region18: #{tpu_custom_call.1} parent=1 // pred_check
      %p108 = pneg %p107
    $region19: #{tpu_custom_call.1} parent=1 // pred_check_branch
      %110 = sbr.rel (%p108) target = $region21
    $region20: #{tpu_custom_call.1} parent=1 // pred_region
      %vm111 = vcmask 7168
      %112 = vst.msk [vmem:[#allocation2] sm:$0xff] %vm111, 0.0
      %113 = vst.msk [vmem:[#allocation2 + $0x8] sm:$0xff] %vm111, 0.0
      %114 = vst.msk [vmem:[#allocation2 + $0x10] sm:$0xff] %vm111, 0.0
    $region21: #{tpu_custom_call.1} parent=1 // pred_fallthru
      _
    %v115 = vld [vmem:[%s84] sm:$0xff]
    %v116 = vld [vmem:[%s84 + $0x8] sm:$0xff]
    %v117 = vld [vmem:[%s84 + $0x10] sm:$0xff]
    %v118 = vld [vmem:[#allocation5] sm:$0xff]
    %v119 = vld [vmem:[#allocation5 + $0x8] sm:$0xff]
    %v120 = vld [vmem:[#allocation5 + $0x10] sm:$0xff]
    %v121 = vld [vmem:[%s100] sm:$0xff]
    %v122 = vld [vmem:[%s100 + $0x8] sm:$0xff]
    %v123 = vld [vmem:[%s100 + $0x10] sm:$0xff]
    %v124 = vmul.f32 %v115, %v118
    %v125 = vmul.f32 %v116, %v119
    %v126 = vmul.f32 %v117, %v120
    %127 = vadd.xlane.f32.xlu0 %v124
    %v128 = vpop.xlane.xlu0 %127
    %129 = vadd.xlane.f32.xlu0 %v125
    %v130 = vpop.xlane.xlu0 %129
    %131 = vadd.xlane.f32.xlu0 %v126
    %v132 = vpop.xlane.xlu0 %131
    %v133 = vsub.f32 1.0, %v128
    %v134 = vsub.f32 1.0, %v130
    %v135 = vsub.f32 1.0, %v132
    %v136 = vsub.f32 %v133, 0.2
    %v137 = vsub.f32 %v134, 0.2
    %v138 = vsub.f32 %v135, 0.2
    %v139 = vmax.f32 %v136, 0.0
    %v140 = vmax.f32 %v137, 0.0
    %v141 = vmax.f32 %v138, 0.0
    %v142 = vmul.f32 %v121, %v139
    %v143 = vmul.f32 %v122, %v140
    %v144 = vmul.f32 %v123, %v141
    %v145 = vsub.f32 1.0, %v121
    %v146 = vsub.f32 1.0, %v122
    %v147 = vsub.f32 1.0, %v123
    %v148 = vsub.f32 0.8, %v133
    %v149 = vsub.f32 0.8, %v134
    %v150 = vsub.f32 0.8, %v135
    %v151 = vmax.f32 %v148, 0.0
    %v152 = vmax.f32 %v149, 0.0
    %v153 = vmax.f32 %v150, 0.0
    %v154 = vmul.f32 %v145, %v151
    %v155 = vmul.f32 %v146, %v152
    %v156 = vmul.f32 %v147, %v153
    %v157 = vadd.f32 %v142, %v154
    %v158 = vadd.f32 %v143, %v155
    %v159 = vadd.f32 %v144, %v156
    %s160 = sadd.s32 %s106, 1
    %s161 = smul.u32 %s160, 24
    %p162 = scmp.le.s32.totalorder %s161, %s105
    // Predicated region
    $region22: #{tpu_custom_call.1} parent=1 // pred_check
      %p163 = pneg %p162
    $region23: #{tpu_custom_call.1} parent=1 // pred_check_branch
      %165 = sbr.rel (%p163) target = $region25
    $region24: #{tpu_custom_call.1} parent=1 // pred_region
      %v166 = vld [vmem:[#allocation2] sm:$0xff]
      %v167 = vld [vmem:[#allocation2 + $0x8] sm:$0xff]
      %v168 = vld [vmem:[#allocation2 + $0x10] sm:$0xff]
      %v169 = vadd.f32 %v166, %v157
      %v170 = vadd.f32 %v167, %v158
      %v171 = vadd.f32 %v168, %v159
      %vm172 = vcmask 7168
      %173 = vst.msk [vmem:[#allocation2] sm:$0xff] %vm172, %v169
      %174 = vst.msk [vmem:[#allocation2 + $0x8] sm:$0xff] %vm172, %v170
      %175 = vst.msk [vmem:[#allocation2 + $0x10] sm:$0xff] %vm172, %v171
    $region25: #{tpu_custom_call.1} parent=1 // pred_fallthru
      _
    %p176 = scmp.gt.s32.totalorder %s161, %s105
    // Predicated region
    $region26: #{tpu_custom_call.1} parent=1 // pred_check
      %p177 = pneg %p176
    $region27: #{tpu_custom_call.1} parent=1 // pred_check_branch
      %179 = sbr.rel (%p177) target = $region29
    $region28: #{tpu_custom_call.1} parent=1 // pred_region
      %v180 = vlaneseq
      %v181 = vshrl.u32 %v180, 7
      %v182 = vadd.s32 %v181, 8
      %v183 = vadd.s32 %v181, 16
      %s184 = smul.u32 %s106, 24
      %v185 = vstv %s184
      %v186 = vadd.s32 %v181, %v185
      %v187 = vadd.s32 %v182, %v185
      %v188 = vadd.s32 %v183, %v185
      %v189 = vld [vmem:[#allocation2] sm:$0xff]
      %v190 = vld [vmem:[#allocation2 + $0x8] sm:$0xff]
      %v191 = vld [vmem:[#allocation2 + $0x10] sm:$0xff]
      %v192 = vstv %s105
      %vm193 = vcmp.lt.s32.totalorder %v186, %v192
      %vm194 = vcmp.lt.s32.totalorder %v187, %v192
      %vm195 = vcmp.lt.s32.totalorder %v188, %v192
      %v196 = vsel %vm193, %v157, 0.0
      %v197 = vsel %vm194, %v158, 0.0
      %v198 = vsel %vm195, %v159, 0.0
      %v199 = vadd.f32 %v189, %v196
      %v200 = vadd.f32 %v190, %v197
      %v201 = vadd.f32 %v191, %v198
      %vm202 = vcmask 7168
      %203 = vst.msk [vmem:[#allocation2] sm:$0xff] %vm202, %v199
      %204 = vst.msk [vmem:[#allocation2 + $0x8] sm:$0xff] %vm202, %v200
      %205 = vst.msk [vmem:[#allocation2 + $0x10] sm:$0xff] %vm202, %v201
    $region29: #{tpu_custom_call.1} parent=1 // pred_fallthru
      _
    // Predicated region
    $region30: #{tpu_custom_call.1} parent=1 // pred_check
      %p206 = pneg %p107
    $region31: #{tpu_custom_call.1} parent=1 // pred_check_branch
      %208 = sbr.rel (%p206) target = $region33
    $region32: #{tpu_custom_call.1} parent=1 // pred_region
      %v209 = vld [vmem:[#allocation2] sm:$0xff]
      %v210 = vld [vmem:[#allocation2 + $0x8] sm:$0xff]
      %v211 = vld [vmem:[#allocation2 + $0x10] sm:$0xff]
      %vm212 = vcmask 7168
      %v213 = vsel %vm212, %v209, 0.0
      %v214 = vsel %vm212, %v210, 0.0
      %v215 = vadd.f32 %v213, %v214
      %v216 = vsel %vm212, %v211, 0.0
      %v217 = vadd.f32 %v215, %v216
      %218 = vadd.xlane.f32.xlu0 %v217
      %v219 = vpop.xlane.xlu0 %218
      %v220 = vrot.slane %v219, 4
      %v221 = vadd.f32 %v219, %v220
      %v222 = vrot.slane %v221, 2
      %v223 = vadd.f32 %v221, %v222
      %v224 = vrot.slane %v223, 1
      %v225 = vadd.f32 %v223, %v224
      %s226 = vtos %v225
      %v227 = vstv %s226
      %228 = vst [vmem:[#allocation8] sm:$0x1] %v227
    $region33: #{tpu_custom_call.1} parent=1 // pred_fallthru
      _
    // Predicated region
    $region34: #{tpu_custom_call.1} parent=1 // pred_check
      _
    $region35: #{tpu_custom_call.1} parent=1 // pred_check_branch
      %230 = sbr.rel (0) target = $region37
    $region36: #{tpu_custom_call.1} parent=1 // pred_region
      %s232 = ssub.s32 16, 16
      %233 = vsyncadd [#allocation7], %s232
      %s235 = sshll.u32 [#allocation8], 4
      %s236 = int_to_ptr.vmem [resolvable:$true] %s235
      %238 = dma.vmem_to_hbm [thread:$0]  %s236, 16, %s4, [#allocation7]
    $region37: #{tpu_custom_call.1} parent=1 // pred_fallthru
      _
    // Predicated region
    $region38: #{tpu_custom_call.1} parent=1 // pred_check
      _
    $region39: #{tpu_custom_call.1} parent=1 // pred_check_branch
      %240 = sbr.rel (0) target = $region41
    $region40: #{tpu_custom_call.1} parent=1 // pred_region
      %241 = dma.done [#allocation7], 16
    $region41: #{tpu_custom_call.1} parent=1 // pred_fallthru
      _
    %242 = vsyncpa [#allocation6], 1
    %243 = vsyncpa [#allocation7], 1

</llo_original>
